<compile_context>
chip_gen: v7x
topology: tpu7x:2x2x1
jax: 0.10.0
libtpu: 0.0.40
codegen_flags: <defaults>
</compile_context>

<pallas_src>
import math
import jax
import jax.numpy as jnp
from jax import lax
from jax.experimental import pallas as pl
from jax.experimental.pallas import tpu as pltpu

_LN_EPS = 1e-5


def _layernorm(h, gamma, beta):
    h = h.astype(jnp.float32)                    # f32 statistics even for bf16 inputs
    mu = jnp.mean(h, axis=-1, keepdims=True)
    var = jnp.mean((h - mu) ** 2, axis=-1, keepdims=True)
    return (h - mu) * lax.rsqrt(var + _LN_EPS) * gamma + beta


def _gelu_exact(x):
    # PyTorch nn.GELU() default = exact erf formulation (kept in f32).
    return 0.5 * x * (1.0 + lax.erf(x * (1.0 / math.sqrt(2.0))))


def mixer_block_kernel(x_ref,
                       g1_ref, be1_ref,          # pre_norm gamma/beta    (1, D)  f32
                       tw1_ref, tb1_ref,         # token-mix fc1 (S, Td) cdt, (Td, 1) f32
                       tw2_ref, tb2_ref,         # token-mix fc2 (Td, S) cdt, (S, 1)  f32
                       g2_ref, be2_ref,          # post_norm gamma/beta   (1, D)  f32
                       cw1_ref, cb1_ref,         # chan-mix fc1  (D, Cd) cdt, (1, Cd) f32
                       cw2_ref, cb2_ref,         # chan-mix fc2  (Cd, D) cdt, (1, D)  f32
                       o_ref):
    bt, s, d = x_ref.shape                       # static batch-block shape
    cdt = tw1_ref.dtype                          # MXU operand dtype (bf16 or f32)

    x2d = x_ref[...].reshape(bt * s, d)          # (bt*S, D), I/O dtype (residual copy)

    # ---- token-mixing branch ----------------------------------------------
    # LayerNorm on (bt*S, D) rows, then fold batch into the lane axis so the
    # whole block goes through ONE pair of matmuls with N = bt*D.
    h_ln = _layernorm(x2d, g1_ref[...], be1_ref[...]).astype(cdt)       # (bt*S, D)
    if bt > 1:
        h_fold = jnp.concatenate(
            [h_ln[b * s:(b + 1) * s, :] for b in range(bt)], axis=-1)    # (S, bt*D)
    else:
        h_fold = h_ln                                                    # (S, D)

    dn = (((0,), (0,)), ((), ()))                # contract lhs dim 0 with rhs dim 0
    u = lax.dot_general(tw1_ref[...], h_fold, dn,
                        preferred_element_type=jnp.float32)              # (Td, bt*D)
    u = _gelu_exact(u + tb1_ref[...]).astype(cdt)
    t = lax.dot_general(tw2_ref[...], u, dn,
                        preferred_element_type=jnp.float32)              # (S, bt*D)
    t = t + tb2_ref[...]

    # Unfold back to per-(b,s) rows and add the residual.
    if bt > 1:
        t_rows = jnp.concatenate(
            [t[:, b * d:(b + 1) * d] for b in range(bt)], axis=0)        # (bt*S, D)
    else:
        t_rows = t
    h = t_rows + x2d.astype(jnp.float32)                                 # (bt*S, D) f32

    # ---- channel-mixing branch (M = bt*S rows, D on lanes) -----------------
    hn = _layernorm(h, g2_ref[...], be2_ref[...]).astype(cdt)
    c = jnp.dot(hn, cw1_ref[...], preferred_element_type=jnp.float32) + cb1_ref[...]
    c = _gelu_exact(c).astype(cdt)
    c = jnp.dot(c, cw2_ref[...], preferred_element_type=jnp.float32) + cb2_ref[...]
    o_ref[...] = (c + h).reshape(bt, s, d).astype(o_ref.dtype)


def _tpu_generation_info():
    """Generation-aware tuning knobs (MXU row granularity, cores, VMEM limit)."""
    kind = ""
    try:
        kind = (jax.devices()[0].device_kind or "").lower()
    except Exception:
        pass
    mib = 1 << 20
    if "v5p" in kind:
        return dict(name="v5p", mxu_rows=128, min_grid_steps=2,
                    vmem_limit_bytes=100 * mib, headroom_bytes=4 * mib)
    if "v5" in kind:                         # v5e / v5 lite: 1 TC, 128-wide MXU
        return dict(name="v5e", mxu_rows=128, min_grid_steps=1,
                    vmem_limit_bytes=100 * mib, headroom_bytes=4 * mib)
    if "v6" in kind or "trillium" in kind:   # v6e: 1 TC, 256-wide MXU, 128 MiB VMEM
        return dict(name="v6e", mxu_rows=256, min_grid_steps=1,
                    vmem_limit_bytes=100 * mib, headroom_bytes=4 * mib)
    if "7" in kind:                          # v7x: 2 TCs, 256-wide MXU, 64 MiB VMEM/TC
        return dict(name="v7x", mxu_rows=256, min_grid_steps=2,
                    vmem_limit_bytes=48 * mib, headroom_bytes=4 * mib)
    return dict(name="tpu", mxu_rows=256, min_grid_steps=1,
                vmem_limit_bytes=48 * mib, headroom_bytes=4 * mib)


def _pick_batch_block(B, S, D, Td, Cd, io_itemsize, cdt_itemsize, weight_bytes, info):
    """Largest feasible batch block that (a) fits the VMEM budget including the
    resident weights, double-buffered in/out blocks and live intermediates,
    (b) prefers >= min_grid_steps even steps (multi-TC parts only), and
    (c) prefers bt*S aligned to the MXU row granularity."""
    budget = info["vmem_limit_bytes"] - weight_bytes - info["headroom_bytes"]

    def activ_bytes(bt):
        f32 = 4
        io_blocks = 2 * 2 * bt * S * D * io_itemsize           # dbl-buffered in + out
        tmp = bt * S * D * (2 * f32 + 2 * cdt_itemsize)        # residual h / token out / LN outs
        tmp += bt * S * Cd * (f32 + cdt_itemsize)              # channel-mix hidden
        tmp += bt * D * Td * (f32 + cdt_itemsize)              # token-mix hidden
        return io_blocks + tmp

    feasible = [bt for bt in range(1, B + 1)
                if B % bt == 0 and activ_bytes(bt) <= budget]
    if not feasible:
        feasible = [1]

    def score(bt):
        steps = B // bt
        good_steps = (steps >= info["min_grid_steps"]
                      and steps % info["min_grid_steps"] == 0)
        mxu_aligned = (bt * S) % info["mxu_rows"] == 0
        return (good_steps, mxu_aligned, bt)

    return max(feasible, key=score)


def prepare_mixer_params(params, compute_dtype=jnp.bfloat16):
    """One-time kernel-layout preparation (hoisted out of the per-call path):
    weight matrices cast to the MXU compute dtype, token-mix biases as column
    vectors (lane-cheap broadcast in the folded layout), LN params / remaining
    biases kept f32 (applied to f32 accumulators)."""
    g1, be1, tw1, tb1, tw2, tb2, g2, be2, cw1, cb1, cw2, cb2 = params
    S, Td = tw1.shape
    D, Cd = cw1.shape
    return [
        g1.reshape(1, D).astype(jnp.float32),
        be1.reshape(1, D).astype(jnp.float32),
        tw1.astype(compute_dtype),
        tb1.reshape(Td, 1).astype(jnp.float32),
        tw2.astype(compute_dtype),
        tb2.reshape(S, 1).astype(jnp.float32),
        g2.reshape(1, D).astype(jnp.float32),
        be2.reshape(1, D).astype(jnp.float32),
        cw1.astype(compute_dtype),
        cb1.reshape(1, Cd).astype(jnp.float32),
        cw2.astype(compute_dtype),
        cb2.reshape(1, D).astype(jnp.float32),
    ]


def mixer_block(x, kparams):
    """x: (B, S, D) = (batch, num_patches, dim); kparams from prepare_mixer_params."""
    B, S, D = x.shape
    tw1, cw1 = kparams[2], kparams[8]
    Td, Cd = tw1.shape[1], cw1.shape[1]
    cdt_itemsize = jnp.dtype(tw1.dtype).itemsize
    weight_bytes = sum(int(p.size) * jnp.dtype(p.dtype).itemsize for p in kparams)

    info = _tpu_generation_info()
    bt = _pick_batch_block(B, S, D, Td, Cd, x.dtype.itemsize, cdt_itemsize,
                           weight_bytes, info)
    grid = (B // bt,)

    # Weights/biases are grid-invariant: one unblocked resident VMEM copy.
    weight_spec = pl.BlockSpec(memory_space=pltpu.MemorySpace.VMEM)
    in_specs = [pl.BlockSpec((bt, S, D), lambda b: (b, 0, 0))]
    in_specs += [weight_spec] * len(kparams)

    return pl.pallas_call(
        mixer_block_kernel,
        out_shape=jax.ShapeDtypeStruct((B, S, D), x.dtype),
        grid=grid,
        in_specs=in_specs,
        out_specs=pl.BlockSpec((bt, S, D), lambda b: (b, 0, 0)),
        compiler_params=pltpu.CompilerParams(
            dimension_semantics=("parallel",),
            vmem_limit_bytes=info["vmem_limit_bytes"],
        ),
    )(x, *kparams)


def make_params(key, num_patches, dim, token_dim, channel_dim):
    """Deterministic synthetic parameters (PyTorch-like layout).
    Linear weights are stored pre-transposed as (in, out) so y = x @ W + b."""
    ks = jax.random.split(key, 8)
    scale = 0.1
    g1 = jnp.ones((1, dim), jnp.float32)
    be1 = jnp.zeros((1, dim), jnp.float32)
    tw1 = scale * jax.random.normal(ks[0], (num_patches, token_dim), jnp.float32)
    tb1 = scale * jax.random.normal(ks[1], (1, token_dim), jnp.float32)
    tw2 = scale * jax.random.normal(ks[2], (token_dim, num_patches), jnp.float32)
    tb2 = scale * jax.random.normal(ks[3], (1, num_patches), jnp.float32)
    g2 = jnp.ones((1, dim), jnp.float32)
    be2 = jnp.zeros((1, dim), jnp.float32)
    cw1 = scale * jax.random.normal(ks[4], (dim, channel_dim), jnp.float32)
    cb1 = scale * jax.random.normal(ks[5], (1, channel_dim), jnp.float32)
    cw2 = scale * jax.random.normal(ks[6], (channel_dim, dim), jnp.float32)
    cb2 = scale * jax.random.normal(ks[7], (1, dim), jnp.float32)
    return [g1, be1, tw1, tb1, tw2, tb2, g2, be2, cw1, cb1, cw2, cb2]


def mixer_block_ref(x, params):
    """Pure-JAX reference mirroring the PyTorch forward (eval mode)."""
    g1, be1, tw1, tb1, tw2, tb2, g2, be2, cw1, cb1, cw2, cb2 = params
    h = _layernorm(x, g1, be1)
    h = jnp.swapaxes(h, -1, -2)
    h = _gelu_exact(h @ tw1 + tb1) @ tw2 + tb2
    h = jnp.swapaxes(h, -1, -2) + x
    res = h
    h2 = _layernorm(h, g2, be2)
    h2 = _gelu_exact(h2 @ cw1 + cb1) @ cw2 + cb2
    return h2 + res


if __name__ == "__main__":
    # Small but tile-friendly shapes: D and channel_dim multiples of 128
    # (lane-dense stores / MXU columns), S multiple of 8 (sublanes).
    B, S, D = 2, 8, 128            # batch, num_patches, dim
    token_dim, channel_dim = 32, 128

    key = jax.random.PRNGKey(0)
    kx, kp = jax.random.split(key)
    x = jax.random.normal(kx, (B, S, D), jnp.float32)
    params = make_params(kp, S, D, token_dim, channel_dim)

    ref = mixer_block_ref(x, params)

    # Exact-semantics check: f32 MXU path.
    kparams_f32 = prepare_mixer_params(params, compute_dtype=jnp.float32)
    out_f32 = jax.block_until_ready(mixer_block(x, kparams_f32))
    assert out_f32.shape == (B, S, D)
    assert jnp.allclose(out_f32, ref, atol=3e-4, rtol=3e-4), "f32 mismatch vs reference"

    # Default fast path: bf16 MXU operands with f32 accumulation
    # (weights cast once here, not per call).
    kparams_bf16 = prepare_mixer_params(params, compute_dtype=jnp.bfloat16)
    out_bf16 = jax.block_until_ready(mixer_block(x, kparams_bf16))
    assert out_bf16.shape == (B, S, D)
    err = jnp.abs(out_bf16 - ref)
    assert float(jnp.max(err)) < 1e-1, "bf16 max-error too large vs reference"
    assert float(jnp.mean(err)) < 2.5e-2, "bf16 mean-error too large vs reference"

    print("KERNEL_OK")
</pallas_src>

<mosaic_0001>
module attributes {stable_mosaic.version = 11 : i64} {
  func.func @mixer_block_kernel(%arg0: i32, %arg1: memref<2x8x128xf32, #tpu.memory_space<vmem>>, %arg2: memref<1x128xf32, #tpu.memory_space<vmem>>, %arg3: memref<1x128xf32, #tpu.memory_space<vmem>>, %arg4: memref<8x32xf32, #tpu.memory_space<vmem>>, %arg5: memref<32x1xf32, #tpu.memory_space<vmem>>, %arg6: memref<32x8xf32, #tpu.memory_space<vmem>>, %arg7: memref<8x1xf32, #tpu.memory_space<vmem>>, %arg8: memref<1x128xf32, #tpu.memory_space<vmem>>, %arg9: memref<1x128xf32, #tpu.memory_space<vmem>>, %arg10: memref<128x128xf32, #tpu.memory_space<vmem>>, %arg11: memref<1x128xf32, #tpu.memory_space<vmem>>, %arg12: memref<128x128xf32, #tpu.memory_space<vmem>>, %arg13: memref<1x128xf32, #tpu.memory_space<vmem>>, %arg14: memref<2x8x128xf32, #tpu.memory_space<vmem>>) attributes {dimension_semantics = [#tpu.dimension_semantics<parallel>], iteration_bounds = array<i64: 1>, scalar_prefetch = 0 : i64, scratch_operands = 0 : i64, tpu.core_type = #tpu.core_type<tc>, window_params = [{transform_indices = @transform_0, window_bounds = array<i64: 2, 8, 128>}, {pipeline_mode = #tpu.pipeline_mode<synchronous>, transform_indices = @transform_1, window_bounds = array<i64: 1, 128>}, {pipeline_mode = #tpu.pipeline_mode<synchronous>, transform_indices = @transform_2, window_bounds = array<i64: 1, 128>}, {pipeline_mode = #tpu.pipeline_mode<synchronous>, transform_indices = @transform_3, window_bounds = array<i64: 8, 32>}, {pipeline_mode = #tpu.pipeline_mode<synchronous>, transform_indices = @transform_4, window_bounds = array<i64: 32, 1>}, {pipeline_mode = #tpu.pipeline_mode<synchronous>, transform_indices = @transform_5, window_bounds = array<i64: 32, 8>}, {pipeline_mode = #tpu.pipeline_mode<synchronous>, transform_indices = @transform_6, window_bounds = array<i64: 8, 1>}, {pipeline_mode = #tpu.pipeline_mode<synchronous>, transform_indices = @transform_7, window_bounds = array<i64: 1, 128>}, {pipeline_mode = #tpu.pipeline_mode<synchronous>, transform_indices = @transform_8, window_bounds = array<i64: 1, 128>}, {pipeline_mode = #tpu.pipeline_mode<synchronous>, transform_indices = @transform_9, window_bounds = array<i64: 128, 128>}, {pipeline_mode = #tpu.pipeline_mode<synchronous>, transform_indices = @transform_10, window_bounds = array<i64: 1, 128>}, {pipeline_mode = #tpu.pipeline_mode<synchronous>, transform_indices = @transform_11, window_bounds = array<i64: 128, 128>}, {pipeline_mode = #tpu.pipeline_mode<synchronous>, transform_indices = @transform_12, window_bounds = array<i64: 1, 128>}, {transform_indices = @transform_13, window_bounds = array<i64: 2, 8, 128>}]} {
    %c0 = arith.constant 0 : index
    %c0_0 = arith.constant 0 : index
    %c0_1 = arith.constant 0 : index
    %0 = vector.load %arg1[%c0, %c0_0, %c0_1] : memref<2x8x128xf32, #tpu.memory_space<vmem>>, vector<2x8x128xf32>
    %1 = vector.shape_cast %0 : vector<2x8x128xf32> to vector<16x128xf32>
    %c0_2 = arith.constant 0 : index
    %c0_3 = arith.constant 0 : index
    %2 = vector.load %arg2[%c0_2, %c0_3] : memref<1x128xf32, #tpu.memory_space<vmem>>, vector<1x128xf32>
    %c0_4 = arith.constant 0 : index
    %c0_5 = arith.constant 0 : index
    %3 = vector.load %arg3[%c0_4, %c0_5] : memref<1x128xf32, #tpu.memory_space<vmem>>, vector<1x128xf32>
    %cst = arith.constant dense<0.000000e+00> : vector<16xf32>
    %4 = vector.multi_reduction <add>, %1, %cst [1] : vector<16x128xf32> to vector<16xf32>
    %5 = vector.shape_cast %4 : vector<16xf32> to vector<16x1xf32>
    %cst_6 = arith.constant 1.280000e+02 : f32
    %6 = vector.broadcast %cst_6 : f32 to vector<16x1xf32>
    %7 = arith.divf %5, %6 : vector<16x1xf32>
    %8 = vector.broadcast %7 : vector<16x1xf32> to vector<16x128xf32>
    %9 = arith.subf %1, %8 : vector<16x128xf32>
    %10 = arith.mulf %9, %9 : vector<16x128xf32>
    %cst_7 = arith.constant dense<0.000000e+00> : vector<16xf32>
    %11 = vector.multi_reduction <add>, %10, %cst_7 [1] : vector<16x128xf32> to vector<16xf32>
    %12 = vector.shape_cast %11 : vector<16xf32> to vector<16x1xf32>
    %cst_8 = arith.constant 1.280000e+02 : f32
    %13 = vector.broadcast %cst_8 : f32 to vector<16x1xf32>
    %14 = arith.divf %12, %13 : vector<16x1xf32>
    %15 = vector.broadcast %7 : vector<16x1xf32> to vector<16x128xf32>
    %16 = arith.subf %1, %15 : vector<16x128xf32>
    %cst_9 = arith.constant 9.99999974E-6 : f32
    %17 = vector.broadcast %cst_9 : f32 to vector<16x1xf32>
    %18 = arith.addf %14, %17 : vector<16x1xf32>
    %19 = math.rsqrt %18 : vector<16x1xf32>
    %20 = vector.broadcast %19 : vector<16x1xf32> to vector<16x128xf32>
    %21 = arith.mulf %16, %20 : vector<16x128xf32>
    %22 = vector.broadcast %2 : vector<1x128xf32> to vector<16x128xf32>
    %23 = arith.mulf %21, %22 : vector<16x128xf32>
    %24 = vector.broadcast %3 : vector<1x128xf32> to vector<16x128xf32>
    %25 = arith.addf %23, %24 : vector<16x128xf32>
    %26 = vector.extract_strided_slice %25 {offsets = [0, 0], sizes = [8, 128], strides = [1, 1]} : vector<16x128xf32> to vector<8x128xf32>
    %27 = vector.extract_strided_slice %25 {offsets = [8, 0], sizes = [8, 128], strides = [1, 1]} : vector<16x128xf32> to vector<8x128xf32>
    %28 = tpu.concatenate %26, %27 in 1 : vector<8x128xf32>, vector<8x128xf32> -> vector<8x256xf32>
    %c0_10 = arith.constant 0 : index
    %c0_11 = arith.constant 0 : index
    %29 = vector.load %arg4[%c0_10, %c0_11] : memref<8x32xf32, #tpu.memory_space<vmem>>, vector<8x32xf32>
    %cst_12 = arith.constant dense<0.000000e+00> : vector<32x256xf32>
    %30 = tpu.matmul %29, %28, %cst_12 {dimension_numbers = #tpu.dot_dimension_numbers<[0], [0], [1], [1], [0, 1, 1, 1], [], []>} : vector<8x32xf32>, vector<8x256xf32>, vector<32x256xf32> -> vector<32x256xf32>
    %c0_13 = arith.constant 0 : index
    %c0_14 = arith.constant 0 : index
    %31 = vector.load %arg5[%c0_13, %c0_14] : memref<32x1xf32, #tpu.memory_space<vmem>>, vector<32x1xf32>
    %32 = vector.broadcast %31 : vector<32x1xf32> to vector<32x256xf32>
    %33 = arith.addf %30, %32 : vector<32x256xf32>
    %cst_15 = arith.constant 5.000000e-01 : f32
    %34 = vector.broadcast %cst_15 : f32 to vector<32x256xf32>
    %35 = arith.mulf %34, %33 : vector<32x256xf32>
    %cst_16 = arith.constant 0.707106769 : f32
    %36 = vector.broadcast %cst_16 : f32 to vector<32x256xf32>
    %37 = arith.mulf %33, %36 : vector<32x256xf32>
    %38 = math.erf %37 : vector<32x256xf32>
    %cst_17 = arith.constant 1.000000e+00 : f32
    %39 = vector.broadcast %cst_17 : f32 to vector<32x256xf32>
    %40 = arith.addf %39, %38 : vector<32x256xf32>
    %41 = arith.mulf %35, %40 : vector<32x256xf32>
    %c0_18 = arith.constant 0 : index
    %c0_19 = arith.constant 0 : index
    %42 = vector.load %arg6[%c0_18, %c0_19] : memref<32x8xf32, #tpu.memory_space<vmem>>, vector<32x8xf32>
    %cst_20 = arith.constant dense<0.000000e+00> : vector<8x256xf32>
    %43 = tpu.matmul %42, %41, %cst_20 {dimension_numbers = #tpu.dot_dimension_numbers<[0], [0], [1], [1], [0, 1, 1, 1], [], []>} : vector<32x8xf32>, vector<32x256xf32>, vector<8x256xf32> -> vector<8x256xf32>
    %c0_21 = arith.constant 0 : index
    %c0_22 = arith.constant 0 : index
    %44 = vector.load %arg7[%c0_21, %c0_22] : memref<8x1xf32, #tpu.memory_space<vmem>>, vector<8x1xf32>
    %45 = vector.broadcast %44 : vector<8x1xf32> to vector<8x256xf32>
    %46 = arith.addf %43, %45 : vector<8x256xf32>
    %47 = vector.extract_strided_slice %46 {offsets = [0, 0], sizes = [8, 128], strides = [1, 1]} : vector<8x256xf32> to vector<8x128xf32>
    %48 = vector.extract_strided_slice %46 {offsets = [0, 128], sizes = [8, 128], strides = [1, 1]} : vector<8x256xf32> to vector<8x128xf32>
    %49 = tpu.concatenate %47, %48 in 0 : vector<8x128xf32>, vector<8x128xf32> -> vector<16x128xf32>
    %50 = arith.addf %49, %1 : vector<16x128xf32>
    %c0_23 = arith.constant 0 : index
    %c0_24 = arith.constant 0 : index
    %51 = vector.load %arg8[%c0_23, %c0_24] : memref<1x128xf32, #tpu.memory_space<vmem>>, vector<1x128xf32>
    %c0_25 = arith.constant 0 : index
    %c0_26 = arith.constant 0 : index
    %52 = vector.load %arg9[%c0_25, %c0_26] : memref<1x128xf32, #tpu.memory_space<vmem>>, vector<1x128xf32>
    %cst_27 = arith.constant dense<0.000000e+00> : vector<16xf32>
    %53 = vector.multi_reduction <add>, %50, %cst_27 [1] : vector<16x128xf32> to vector<16xf32>
    %54 = vector.shape_cast %53 : vector<16xf32> to vector<16x1xf32>
    %cst_28 = arith.constant 1.280000e+02 : f32
    %55 = vector.broadcast %cst_28 : f32 to vector<16x1xf32>
    %56 = arith.divf %54, %55 : vector<16x1xf32>
    %57 = vector.broadcast %56 : vector<16x1xf32> to vector<16x128xf32>
    %58 = arith.subf %50, %57 : vector<16x128xf32>
    %59 = arith.mulf %58, %58 : vector<16x128xf32>
    %cst_29 = arith.constant dense<0.000000e+00> : vector<16xf32>
    %60 = vector.multi_reduction <add>, %59, %cst_29 [1] : vector<16x128xf32> to vector<16xf32>
    %61 = vector.shape_cast %60 : vector<16xf32> to vector<16x1xf32>
    %cst_30 = arith.constant 1.280000e+02 : f32
    %62 = vector.broadcast %cst_30 : f32 to vector<16x1xf32>
    %63 = arith.divf %61, %62 : vector<16x1xf32>
    %64 = vector.broadcast %56 : vector<16x1xf32> to vector<16x128xf32>
    %65 = arith.subf %50, %64 : vector<16x128xf32>
    %cst_31 = arith.constant 9.99999974E-6 : f32
    %66 = vector.broadcast %cst_31 : f32 to vector<16x1xf32>
    %67 = arith.addf %63, %66 : vector<16x1xf32>
    %68 = math.rsqrt %67 : vector<16x1xf32>
    %69 = vector.broadcast %68 : vector<16x1xf32> to vector<16x128xf32>
    %70 = arith.mulf %65, %69 : vector<16x128xf32>
    %71 = vector.broadcast %51 : vector<1x128xf32> to vector<16x128xf32>
    %72 = arith.mulf %70, %71 : vector<16x128xf32>
    %73 = vector.broadcast %52 : vector<1x128xf32> to vector<16x128xf32>
    %74 = arith.addf %72, %73 : vector<16x128xf32>
    %c0_32 = arith.constant 0 : index
    %c0_33 = arith.constant 0 : index
    %75 = vector.load %arg10[%c0_32, %c0_33] : memref<128x128xf32, #tpu.memory_space<vmem>>, vector<128x128xf32>
    %cst_34 = arith.constant dense<0.000000e+00> : vector<16x128xf32>
    %76 = tpu.matmul %74, %75, %cst_34 {dimension_numbers = #tpu.dot_dimension_numbers<[1], [0], [0], [1], [0, 0, 1, 1], [], []>} : vector<16x128xf32>, vector<128x128xf32>, vector<16x128xf32> -> vector<16x128xf32>
    %c0_35 = arith.constant 0 : index
    %c0_36 = arith.constant 0 : index
    %77 = vector.load %arg11[%c0_35, %c0_36] : memref<1x128xf32, #tpu.memory_space<vmem>>, vector<1x128xf32>
    %78 = vector.broadcast %77 : vector<1x128xf32> to vector<16x128xf32>
    %79 = arith.addf %76, %78 : vector<16x128xf32>
    %cst_37 = arith.constant 5.000000e-01 : f32
    %80 = vector.broadcast %cst_37 : f32 to vector<16x128xf32>
    %81 = arith.mulf %80, %79 : vector<16x128xf32>
    %cst_38 = arith.constant 0.707106769 : f32
    %82 = vector.broadcast %cst_38 : f32 to vector<16x128xf32>
    %83 = arith.mulf %79, %82 : vector<16x128xf32>
    %84 = math.erf %83 : vector<16x128xf32>
    %cst_39 = arith.constant 1.000000e+00 : f32
    %85 = vector.broadcast %cst_39 : f32 to vector<16x128xf32>
    %86 = arith.addf %85, %84 : vector<16x128xf32>
    %87 = arith.mulf %81, %86 : vector<16x128xf32>
    %c0_40 = arith.constant 0 : index
    %c0_41 = arith.constant 0 : index
    %88 = vector.load %arg12[%c0_40, %c0_41] : memref<128x128xf32, #tpu.memory_space<vmem>>, vector<128x128xf32>
    %cst_42 = arith.constant dense<0.000000e+00> : vector<16x128xf32>
    %89 = tpu.matmul %87, %88, %cst_42 {dimension_numbers = #tpu.dot_dimension_numbers<[1], [0], [0], [1], [0, 0, 1, 1], [], []>} : vector<16x128xf32>, vector<128x128xf32>, vector<16x128xf32> -> vector<16x128xf32>
    %c0_43 = arith.constant 0 : index
    %c0_44 = arith.constant 0 : index
    %90 = vector.load %arg13[%c0_43, %c0_44] : memref<1x128xf32, #tpu.memory_space<vmem>>, vector<1x128xf32>
    %91 = vector.broadcast %90 : vector<1x128xf32> to vector<16x128xf32>
    %92 = arith.addf %89, %91 : vector<16x128xf32>
    %93 = arith.addf %92, %50 : vector<16x128xf32>
    %94 = vector.shape_cast %93 : vector<16x128xf32> to vector<2x8x128xf32>
    %c0_45 = arith.constant 0 : index
    %c0_46 = arith.constant 0 : index
    %c0_47 = arith.constant 0 : index
    %95 = vector.load %arg14[%c0_45, %c0_46, %c0_47] : memref<2x8x128xf32, #tpu.memory_space<vmem>>, vector<2x8x128xf32>
    tpu.vector_store %arg14[%c0_45, %c0_46, %c0_47], %94 {strides = array<i32>} : memref<2x8x128xf32, #tpu.memory_space<vmem>>, vector<2x8x128xf32>,
    return
  }
  func.func @transform_0(%arg0: i32) -> (i32, i32, i32) {
    %c0_i32 = arith.constant 0 : i32
    %c0_i32_0 = arith.constant 0 : i32
    %c0_i32_1 = arith.constant 0 : i32
    return %arg0, %c0_i32, %c0_i32_0 : i32, i32, i32
  }
  func.func @transform_1(%arg0: i32) -> (i32, i32) {
    %c0_i32 = arith.constant 0 : i32
    %c0_i32_0 = arith.constant 0 : i32
    %c0_i32_1 = arith.constant 0 : i32
    return %c0_i32, %c0_i32_0 : i32, i32
  }
  func.func @transform_2(%arg0: i32) -> (i32, i32) {
    %c0_i32 = arith.constant 0 : i32
    %c0_i32_0 = arith.constant 0 : i32
    %c0_i32_1 = arith.constant 0 : i32
    return %c0_i32, %c0_i32_0 : i32, i32
  }
  func.func @transform_3(%arg0: i32) -> (i32, i32) {
    %c0_i32 = arith.constant 0 : i32
    %c0_i32_0 = arith.constant 0 : i32
    %c0_i32_1 = arith.constant 0 : i32
    return %c0_i32, %c0_i32_0 : i32, i32
  }
  func.func @transform_4(%arg0: i32) -> (i32, i32) {
    %c0_i32 = arith.constant 0 : i32
    %c0_i32_0 = arith.constant 0 : i32
    %c0_i32_1 = arith.constant 0 : i32
    return %c0_i32, %c0_i32_0 : i32, i32
  }
  func.func @transform_5(%arg0: i32) -> (i32, i32) {
    %c0_i32 = arith.constant 0 : i32
    %c0_i32_0 = arith.constant 0 : i32
    %c0_i32_1 = arith.constant 0 : i32
    return %c0_i32, %c0_i32_0 : i32, i32
  }
  func.func @transform_6(%arg0: i32) -> (i32, i32) {
    %c0_i32 = arith.constant 0 : i32
    %c0_i32_0 = arith.constant 0 : i32
    %c0_i32_1 = arith.constant 0 : i32
    return %c0_i32, %c0_i32_0 : i32, i32
  }
  func.func @transform_7(%arg0: i32) -> (i32, i32) {
    %c0_i32 = arith.constant 0 : i32
    %c0_i32_0 = arith.constant 0 : i32
    %c0_i32_1 = arith.constant 0 : i32
    return %c0_i32, %c0_i32_0 : i32, i32
  }
  func.func @transform_8(%arg0: i32) -> (i32, i32) {
    %c0_i32 = arith.constant 0 : i32
    %c0_i32_0 = arith.constant 0 : i32
    %c0_i32_1 = arith.constant 0 : i32
    return %c0_i32, %c0_i32_0 : i32, i32
  }
  func.func @transform_9(%arg0: i32) -> (i32, i32) {
    %c0_i32 = arith.constant 0 : i32
    %c0_i32_0 = arith.constant 0 : i32
    %c0_i32_1 = arith.constant 0 : i32
    return %c0_i32, %c0_i32_0 : i32, i32
  }
  func.func @transform_10(%arg0: i32) -> (i32, i32) {
    %c0_i32 = arith.constant 0 : i32
    %c0_i32_0 = arith.constant 0 : i32
    %c0_i32_1 = arith.constant 0 : i32
    return %c0_i32, %c0_i32_0 : i32, i32
  }
  func.func @transform_11(%arg0: i32) -> (i32, i32) {
    %c0_i32 = arith.constant 0 : i32
    %c0_i32_0 = arith.constant 0 : i32
    %c0_i32_1 = arith.constant 0 : i32
    return %c0_i32, %c0_i32_0 : i32, i32
  }
  func.func @transform_12(%arg0: i32) -> (i32, i32) {
    %c0_i32 = arith.constant 0 : i32
    %c0_i32_0 = arith.constant 0 : i32
    %c0_i32_1 = arith.constant 0 : i32
    return %c0_i32, %c0_i32_0 : i32, i32
  }
  func.func @transform_13(%arg0: i32) -> (i32, i32, i32) {
    %c0_i32 = arith.constant 0 : i32
    %c0_i32_0 = arith.constant 0 : i32
    %c0_i32_1 = arith.constant 0 : i32
    return %arg0, %c0_i32, %c0_i32_0 : i32, i32, i32
  }
}

</mosaic_0001>

<llo_original>
// kernel: tpu_custom_call.1
$region0: #{tpu_custom_call.1}
  #allocation0 [shape = 'u32[]', space=smem, size = 0x4, offset = 0x4, fixed_abs, tag = 'smem constant byte address 0x4 - core index']
  #allocation1 [shape = 'u32[144,128]{1,0:T(1,128)}', space=vmem, size = 0x12000, scoped, tag = 'internal scratch']
  %s0 = inlined_call_operand.vmem [shape: f32[2,8,128], index: 0, kind: input, shape index: {}]
  %s1 = inlined_call_operand.vmem [shape: f32[1,128], index: 1, kind: input, shape index: {}]
  %s2 = inlined_call_operand.vmem [shape: f32[1,128], index: 2, kind: input, shape index: {}]
  %s3 = inlined_call_operand.vmem [shape: f32[8,32], index: 3, kind: input, shape index: {}]
  %s4 = inlined_call_operand.vmem [shape: f32[32,1], index: 4, kind: input, shape index: {}]
  %s5 = inlined_call_operand.vmem [shape: f32[32,8], index: 5, kind: input, shape index: {}]
  %s6 = inlined_call_operand.vmem [shape: f32[8,1], index: 6, kind: input, shape index: {}]
  %s7 = inlined_call_operand.vmem [shape: f32[1,128], index: 7, kind: input, shape index: {}]
  %s8 = inlined_call_operand.vmem [shape: f32[1,128], index: 8, kind: input, shape index: {}]
  %s9 = inlined_call_operand.hbm [shape: f32[128,128], index: 9, kind: input, shape index: {}]
  %s10 = inlined_call_operand.vmem [shape: f32[1,128], index: 10, kind: input, shape index: {}]
  %s11 = inlined_call_operand.hbm [shape: f32[128,128], index: 11, kind: input, shape index: {}]
  %s12 = inlined_call_operand.vmem [shape: f32[1,128], index: 12, kind: input, shape index: {}]
  %s13 = inlined_call_operand.hbm [shape: f32[2,8,128], index: 13, kind: output, shape index: {}]
  %s14 = sld [smem:[#allocation0]]
  $region70: #{tpu_custom_call.1} parent=0
    _
  %s16 = ssub.s32 1, %s14
  %s17 = scalar_select 0, %s16, %s14
  $region1: #{tpu_custom_call.1} parent=0
    #allocation2 [shape = 'u8[65536]{0}', space=vmem, size = 0x10000, scoped, tag = 'input window, operand 9, single buffered']
    #allocation3 [shape = 's32[1]{0}', space=sflag, size = 0x4, scoped, tag = 'scoped memory for tpu_custom_call.1']
    #allocation4 [shape = 's32[1]{0}', space=sflag, size = 0x4, scoped, tag = 'scoped memory for tpu_custom_call.1']
    #allocation5 [shape = 'u8[65536]{0}', space=vmem, size = 0x10000, scoped, tag = 'input window, operand 11, single buffered']
    #allocation6 [shape = 's32[1]{0}', space=sflag, size = 0x4, scoped, tag = 'scoped memory for tpu_custom_call.1']
    #allocation7 [shape = 'u8[8192]{0}', space=vmem, size = 0x2000, scoped, tag = 'output window, operand 0, single buffered']
    %18 = vsyncpa [#allocation3], 0
    %19 = vsyncpa [#allocation6], 0
    %20 = vsyncpa [#allocation4], 0
    // Predicated region
    $region2: #{tpu_custom_call.1} parent=1 // pred_check
      _
    $region3: #{tpu_custom_call.1} parent=1 // pred_check_branch
      %22 = sbr.rel (0) target = $region5
    $region4: #{tpu_custom_call.1} parent=1 // pred_region
      _
    $region5: #{tpu_custom_call.1} parent=1 // pred_fallthru
      _
    // Predicated region
    $region6: #{tpu_custom_call.1} parent=1 // pred_check
      _
    $region7: #{tpu_custom_call.1} parent=1 // pred_check_branch
      %24 = sbr.rel (0) target = $region9
    $region8: #{tpu_custom_call.1} parent=1 // pred_region
      _
    $region9: #{tpu_custom_call.1} parent=1 // pred_fallthru
      _
    // Predicated region
    $region10: #{tpu_custom_call.1} parent=1 // pred_check
      _
    $region11: #{tpu_custom_call.1} parent=1 // pred_check_branch
      %26 = sbr.rel (0) target = $region13
    $region12: #{tpu_custom_call.1} parent=1 // pred_region
      _
    $region13: #{tpu_custom_call.1} parent=1 // pred_fallthru
      _
    // Predicated region
    $region14: #{tpu_custom_call.1} parent=1 // pred_check
      _
    $region15: #{tpu_custom_call.1} parent=1 // pred_check_branch
      %28 = sbr.rel (0) target = $region17
    $region16: #{tpu_custom_call.1} parent=1 // pred_region
      _
    $region17: #{tpu_custom_call.1} parent=1 // pred_fallthru
      _
    // Predicated region
    $region18: #{tpu_custom_call.1} parent=1 // pred_check
      _
    $region19: #{tpu_custom_call.1} parent=1 // pred_check_branch
      %30 = sbr.rel (0) target = $region21
    $region20: #{tpu_custom_call.1} parent=1 // pred_region
      _
    $region21: #{tpu_custom_call.1} parent=1 // pred_fallthru
      _
    // Predicated region
    $region22: #{tpu_custom_call.1} parent=1 // pred_check
      _
    $region23: #{tpu_custom_call.1} parent=1 // pred_check_branch
      %32 = sbr.rel (0) target = $region25
    $region24: #{tpu_custom_call.1} parent=1 // pred_region
      _
    $region25: #{tpu_custom_call.1} parent=1 // pred_fallthru
      _
    // Predicated region
    $region26: #{tpu_custom_call.1} parent=1 // pred_check
      _
    $region27: #{tpu_custom_call.1} parent=1 // pred_check_branch
      %34 = sbr.rel (0) target = $region29
    $region28: #{tpu_custom_call.1} parent=1 // pred_region
      _
    $region29: #{tpu_custom_call.1} parent=1 // pred_fallthru
      _
    // Predicated region
    $region30: #{tpu_custom_call.1} parent=1 // pred_check
      _
    $region31: #{tpu_custom_call.1} parent=1 // pred_check_branch
      %36 = sbr.rel (0) target = $region33
    $region32: #{tpu_custom_call.1} parent=1 // pred_region
      _
    $region33: #{tpu_custom_call.1} parent=1 // pred_fallthru
      _
    // Predicated region
    $region34: #{tpu_custom_call.1} parent=1 // pred_check
      _
    $region35: #{tpu_custom_call.1} parent=1 // pred_check_branch
      %38 = sbr.rel (0) target = $region37
    $region36: #{tpu_custom_call.1} parent=1 // pred_region
      _
    $region37: #{tpu_custom_call.1} parent=1 // pred_fallthru
      _
    // Predicated region
    $region38: #{tpu_custom_call.1} parent=1 // pred_check
      _
    $region39: #{tpu_custom_call.1} parent=1 // pred_check_branch
      %40 = sbr.rel (0) target = $region41
    $region40: #{tpu_custom_call.1} parent=1 // pred_region
      %s42 = ssub.s32 2048, 2048
      %43 = vsyncadd [#allocation3], %s42
      %s44 = sshll.u32 [#allocation2], 4
      %s45 = int_to_ptr.vmem [resolvable:$true] %s44
      %50 = dma.hbm_to_vmem [thread:$0]  %s9, 2048, %s45, [#allocation3], 128, 128, 8
    $region41: #{tpu_custom_call.1} parent=1 // pred_fallthru
      _
    // Predicated region
    $region42: #{tpu_custom_call.1} parent=1 // pred_check
      _
    $region43: #{tpu_custom_call.1} parent=1 // pred_check_branch
      %52 = sbr.rel (0) target = $region45
    $region44: #{tpu_custom_call.1} parent=1 // pred_region
      _
    $region45: #{tpu_custom_call.1} parent=1 // pred_fallthru
      _
    // Predicated region
    $region46: #{tpu_custom_call.1} parent=1 // pred_check
      _
    $region47: #{tpu_custom_call.1} parent=1 // pred_check_branch
      %54 = sbr.rel (0) target = $region49
    $region48: #{tpu_custom_call.1} parent=1 // pred_region
      %s56 = ssub.s32 2048, 2048
      %57 = vsyncadd [#allocation6], %s56
      %s58 = sshll.u32 [#allocation5], 4
      %s59 = int_to_ptr.vmem [resolvable:$true] %s58
      %64 = dma.hbm_to_vmem [thread:$0]  %s11, 2048, %s59, [#allocation6], 128, 128, 8
    $region49: #{tpu_custom_call.1} parent=1 // pred_fallthru
      _
    // Predicated region
    $region50: #{tpu_custom_call.1} parent=1 // pred_check
      _
    $region51: #{tpu_custom_call.1} parent=1 // pred_check_branch
      %66 = sbr.rel (0) target = $region53
    $region52: #{tpu_custom_call.1} parent=1 // pred_region
      _
    $region53: #{tpu_custom_call.1} parent=1 // pred_fallthru
      _
    // Predicated region
    $region54: #{tpu_custom_call.1} parent=1 // pred_check
      _
    $region55: #{tpu_custom_call.1} parent=1 // pred_check_branch
      %68 = sbr.rel (0) target = $region57
    $region56: #{tpu_custom_call.1} parent=1 // pred_region
      %69 = dma.done [#allocation3], 2048
    $region57: #{tpu_custom_call.1} parent=1 // pred_fallthru
      _
    // Predicated region
    $region58: #{tpu_custom_call.1} parent=1 // pred_check
      _
    $region59: #{tpu_custom_call.1} parent=1 // pred_check_branch
      %71 = sbr.rel (0) target = $region61
    $region60: #{tpu_custom_call.1} parent=1 // pred_region
      %72 = dma.done [#allocation6], 2048
    $region61: #{tpu_custom_call.1} parent=1 // pred_fallthru
      _
    %v73 = vld [vmem:[%s0] sm:$0xff]
    %v74 = vld [vmem:[%s0 + $0x8] sm:$0xff]
    %v75 = vld [vmem:[%s1] sm:$0x1]
    %v76 = vld [vmem:[%s2] sm:$0x1]
    %77 = vadd.xlane.f32.xlu0 %v73
    %v78 = vpop.xlane.xlu0 %77
    %79 = vadd.xlane.f32.xlu0 %v74
    %v80 = vpop.xlane.xlu0 %79
    %v81 = vrcp.pop 128.0
    %v82 = vmul.f32 %v78, %v81
    %v83 = vmul.f32 %v80, %v81
    %v84 = vsub.f32 %v73, %v82
    %v85 = vsub.f32 %v74, %v83
    %v86 = vmul.f32 %v84, %v84
    %v87 = vmul.f32 %v85, %v85
    %88 = vadd.xlane.f32.xlu0 %v86
    %v89 = vpop.xlane.xlu0 %88
    %90 = vadd.xlane.f32.xlu0 %v87
    %v91 = vpop.xlane.xlu0 %90
    %v92 = vmul.f32 %v89, %v81
    %v93 = vmul.f32 %v91, %v81
    %v94 = vadd.f32 %v92, 1e-05
    %v95 = vadd.f32 %v93, 1e-05
    %v96 = vrsqrt.pop %v94
    %v97 = vrsqrt.pop %v95
    %v98 = vmul.f32 %v84, %v96
    %v99 = vmul.f32 %v85, %v97
    %v101 = vlaneseq
    %v102 = vshrl.u32 %v101, 7
    %v103 = vsub.s32 0, %v102
    %v104 = vrot.slane %v75, %v103
    %v106 = vmul.f32 %v98, %v104
    %v107 = vmul.f32 %v99, %v104
    %v109 = vlaneseq
    %v110 = vshrl.u32 %v109, 7
    %v111 = vsub.s32 0, %v110
    %v112 = vrot.slane %v76, %v111
    %v114 = vadd.f32 %v106, %v112
    %v115 = vadd.f32 %v107, %v112
    %v116 = vld [vmem:[%s3] sm:$0xff]
    %v117 = vld [vmem:[%s4] sm:$0xff]
    %v118 = vld [vmem:[%s4 + $0x8] sm:$0xff]
    %v119 = vld [vmem:[%s4 + $0x10] sm:$0xff]
    %v120 = vld [vmem:[%s4 + $0x18] sm:$0xff]
    %122 = vset.pattern.permute.xlu0 0
    %123 = vperm.xlu0 %122, %v117
    %v124 = vpop.permute.xlu0 %123
    %127 = vset.pattern.permute.xlu0 0
    %128 = vperm.xlu0 %127, %v118
    %v129 = vpop.permute.xlu0 %128
    %132 = vset.pattern.permute.xlu0 0
    %133 = vperm.xlu0 %132, %v119
    %v134 = vpop.permute.xlu0 %133
    %137 = vset.pattern.permute.xlu0 0
    %138 = vperm.xlu0 %137, %v120
    %v139 = vpop.permute.xlu0 %138
    %141 = vxpose.xlu0.b32.start [1/16] %v116, 128
    %142 = vxpose.xlu0.b32.cont [2/16] 0.0, 128
    %143 = vxpose.xlu0.b32.cont [3/16] 0.0, 128
    %144 = vxpose.xlu0.b32.cont [4/16] 0.0, 128
    %145 = vxpose.xlu0.b32.cont [5/16] 0.0, 128
    %146 = vxpose.xlu0.b32.cont [6/16] 0.0, 128
    %147 = vxpose.xlu0.b32.cont [7/16] 0.0, 128
    %148 = vxpose.xlu0.b32.cont [8/16] 0.0, 128
    %149 = vxpose.xlu0.b32.cont [9/16] 0.0, 128
    %150 = vxpose.xlu0.b32.cont [10/16] 0.0, 128
    %151 = vxpose.xlu0.b32.cont [11/16] 0.0, 128
    %152 = vxpose.xlu0.b32.cont [12/16] 0.0, 128
    %153 = vxpose.xlu0.b32.cont [13/16] 0.0, 128
    %154 = vxpose.xlu0.b32.cont [14/16] 0.0, 128
    %155 = vxpose.xlu0.b32.cont [15/16] 0.0, 128
    %156 = vxpose.xlu0.b32.end [16/16] 0.0, 128
    %v157 = vpop.trf.xlu0
    %v158 = vpop.trf.xlu0
    %v159 = vpop.trf.xlu0
    %v160 = vpop.trf.xlu0
    %v161 = vpop.trf.xlu0
    %v162 = vpop.trf.xlu0
    %v163 = vpop.trf.xlu0
    %v164 = vpop.trf.xlu0
    %v165 = vpop.trf.xlu0
    %v166 = vpop.trf.xlu0
    %v167 = vpop.trf.xlu0
    %v168 = vpop.trf.xlu0
    %v169 = vpop.trf.xlu0
    %v170 = vpop.trf.xlu0
    %v171 = vpop.trf.xlu0
    %v172 = vpop.trf.xlu0
    %vm173 = vcmask 64512
    %v175 = vsel %vm173, %v157, 0
    %v178 = vsel %vm173, %v158, 0
    %v181 = vsel %vm173, %v159, 0
    %v184 = vsel %vm173, %v160, 0
    %186 = vmatprep.subr.mxu0 %v115
    %187 = vmatpush1.msra.mxu0 %v114
    %188 = vmatprep.subr.mxu0 0.0
    %189 = vmatpush1.msra.mxu0 0.0
    %190 = vmatprep.subr.mxu0 0.0
    %191 = vmatpush1.msra.mxu0 0.0
    %192 = vmatprep.subr.mxu0 0.0
    %193 = vmatpush1.msra.mxu0 0.0
    %194 = vmatprep.subr.mxu0 0.0
    %195 = vmatpush1.msra.mxu0 0.0
    %196 = vmatprep.subr.mxu0 0.0
    %197 = vmatpush1.msra.mxu0 0.0
    %198 = vmatprep.subr.mxu0 0.0
    %199 = vmatpush1.msra.mxu0 0.0
    %200 = vmatprep.subr.mxu0 0.0
    %201 = vmatpush1.msra.mxu0 0.0
    %202 = vmatprep.subr.mxu0 0.0
    %203 = vmatpush1.msra.mxu0 0.0
    %204 = vmatprep.subr.mxu0 0.0
    %205 = vmatpush1.msra.mxu0 0.0
    %206 = vmatprep.subr.mxu0 0.0
    %207 = vmatpush1.msra.mxu0 0.0
    %208 = vmatprep.subr.mxu0 0.0
    %209 = vmatpush1.msra.mxu0 0.0
    %210 = vmatprep.subr.mxu0 0.0
    %211 = vmatpush1.msra.mxu0 0.0
    %212 = vmatprep.subr.mxu0 0.0
    %213 = vmatpush1.msra.mxu0 0.0
    %214 = vmatprep.subr.mxu0 0.0
    %215 = vmatpush1.msra.mxu0 0.0
    %216 = vmatprep.subr.mxu0 0.0
    %217 = vmatpush1.msra.mxu0 0.0
    %218 = vmatprep.subr.mxu0 0.0
    %219 = vmatpush1.msra.mxu0 0.0
    %220 = vmatprep.subr.mxu0 0.0
    %221 = vmatpush1.msra.mxu0 0.0
    %222 = vmatprep.subr.mxu0 0.0
    %223 = vmatpush1.msra.mxu0 0.0
    %224 = vmatprep.subr.mxu0 0.0
    %225 = vmatpush1.msra.mxu0 0.0
    %226 = vmatprep.subr.mxu0 0.0
    %227 = vmatpush1.msra.mxu0 0.0
    %228 = vmatprep.subr.mxu0 0.0
    %229 = vmatpush1.msra.mxu0 0.0
    %230 = vmatprep.subr.mxu0 0.0
    %231 = vmatpush1.msra.mxu0 0.0
    %232 = vmatprep.subr.mxu0 0.0
    %233 = vmatpush1.msra.mxu0 0.0
    %234 = vmatprep.subr.mxu0 0.0
    %235 = vmatpush1.msra.mxu0 0.0
    %236 = vmatprep.subr.mxu0 0.0
    %237 = vmatpush1.msra.mxu0 0.0
    %238 = vmatprep.subr.mxu0 0.0
    %239 = vmatpush1.msra.mxu0 0.0
    %240 = vmatprep.subr.mxu0 0.0
    %241 = vmatpush1.msra.mxu0 0.0
    %242 = vmatprep.subr.mxu0 0.0
    %243 = vmatpush1.msra.mxu0 0.0
    %244 = vmatprep.subr.mxu0 0.0
    %245 = vmatpush1.msra.mxu0 0.0
    %246 = vmatprep.subr.mxu0 0.0
    %247 = vmatpush1.msra.mxu0 0.0
    %248 = vmatprep.subr.mxu0 0.0
    %249 = vmatpush1.msra.mxu0 0.0
    %250 = vmatprep.mubr.f32.mxu0 0.0
    %251 = vmatmul.mubr.f32.gmra.mrb[0].mxu0 %v175
    %v252 = vpop.f32.mrb[0].mxu0
    %v253 = vadd.f32 %v124, %v252
    %v254 = vpop.f32.mrb[0].mxu0
    %v255 = vadd.f32 %v124, %v254
    %256 = vmatprep.mubr.f32.mxu0 0.0
    %257 = vmatmul.mubr.f32.gmra.mrb[0].mxu0 %v178
    %v258 = vpop.f32.mrb[0].mxu0
    %v259 = vadd.f32 %v129, %v258
    %v260 = vpop.f32.mrb[0].mxu0
    %v261 = vadd.f32 %v129, %v260
    %262 = vmatprep.mubr.f32.mxu0 0.0
    %263 = vmatmul.mubr.f32.gmra.mrb[0].mxu0 %v181
    %v264 = vpop.f32.mrb[0].mxu0
    %v265 = vadd.f32 %v134, %v264
    %v266 = vpop.f32.mrb[0].mxu0
    %v267 = vadd.f32 %v134, %v266
    %268 = vmatprep.mubr.f32.mxu0 0.0
    %269 = vmatmul.mubr.f32.gmra.mrb[0].mxu0 %v184
    %v270 = vpop.f32.mrb[0].mxu0
    %v271 = vadd.f32 %v139, %v270
    %v272 = vpop.f32.mrb[0].mxu0
    %v273 = vadd.f32 %v139, %v272
    %274 = vdwg.mxu0
    %v275 = vmul.f32 %v253, 0.5
    %v276 = vmul.f32 %v255, 0.5
    %v277 = vmul.f32 %v259, 0.5
    %v278 = vmul.f32 %v261, 0.5
    %v279 = vmul.f32 %v265, 0.5
    %v280 = vmul.f32 %v267, 0.5
    %v281 = vmul.f32 %v271, 0.5
    %v282 = vmul.f32 %v273, 0.5
    %v283 = vmul.f32 %v253, 0.70710677
    %v284 = vmul.f32 %v255, 0.70710677
    %v285 = vmul.f32 %v259, 0.70710677
    %v286 = vmul.f32 %v261, 0.70710677
    %v287 = vmul.f32 %v265, 0.70710677
    %v288 = vmul.f32 %v267, 0.70710677
    %v289 = vmul.f32 %v271, 0.70710677
    %v290 = vmul.f32 %v273, 0.70710677
    %v291 = verf.f32.pop %v283
    %v292 = verf.f32.pop %v284
    %v293 = verf.f32.pop %v285
    %v294 = verf.f32.pop %v286
    %v295 = verf.f32.pop %v287
    %v296 = verf.f32.pop %v288
    %v297 = verf.f32.pop %v289
    %v298 = verf.f32.pop %v290
    %v299 = vadd.f32 %v291, 1.0
    %v300 = vadd.f32 %v292, 1.0
    %v301 = vadd.f32 %v293, 1.0
    %v302 = vadd.f32 %v294, 1.0
    %v303 = vadd.f32 %v295, 1.0
    %v304 = vadd.f32 %v296, 1.0
    %v305 = vadd.f32 %v297, 1.0
    %v306 = vadd.f32 %v298, 1.0
    %v307 = vmul.f32 %v275, %v299
    %v308 = vmul.f32 %v276, %v300
    %v309 = vmul.f32 %v277, %v301
    %v310 = vmul.f32 %v278, %v302
    %v311 = vmul.f32 %v279, %v303
    %v312 = vmul.f32 %v280, %v304
    %v313 = vmul.f32 %v281, %v305
    %v314 = vmul.f32 %v282, %v306
    %v315 = vld [vmem:[%s5] sm:$0xff]
    %v316 = vld [vmem:[%s5 + $0x8] sm:$0xff]
    %v317 = vld [vmem:[%s5 + $0x10] sm:$0xff]
    %v318 = vld [vmem:[%s5 + $0x18] sm:$0xff]
    %v319 = vld [vmem:[%s6] sm:$0xff]
    %321 = vset.pattern.permute.xlu0 0
    %322 = vperm.xlu0 %321, %v319
    %v323 = vpop.permute.xlu0 %322
    %325 = vxpose.xlu0.b32.start [1/16] %v315, 128
    %326 = vxpose.xlu0.b32.cont [2/16] %v316, 128
    %327 = vxpose.xlu0.b32.cont [3/16] %v317, 128
    %328 = vxpose.xlu0.b32.cont [4/16] %v318, 128
    %329 = vxpose.xlu0.b32.cont [5/16] 0.0, 128
    %330 = vxpose.xlu0.b32.cont [6/16] 0.0, 128
    %331 = vxpose.xlu0.b32.cont [7/16] 0.0, 128
    %332 = vxpose.xlu0.b32.cont [8/16] 0.0, 128
    %333 = vxpose.xlu0.b32.cont [9/16] 0.0, 128
    %334 = vxpose.xlu0.b32.cont [10/16] 0.0, 128
    %335 = vxpose.xlu0.b32.cont [11/16] 0.0, 128
    %336 = vxpose.xlu0.b32.cont [12/16] 0.0, 128
    %337 = vxpose.xlu0.b32.cont [13/16] 0.0, 128
    %338 = vxpose.xlu0.b32.cont [14/16] 0.0, 128
    %339 = vxpose.xlu0.b32.cont [15/16] 0.0, 128
    %340 = vxpose.xlu0.b32.end [16/16] 0.0, 128
    %v341 = vpop.trf.xlu0
    %v342 = vpop.trf.xlu0
    %v343 = vpop.trf.xlu0
    %v344 = vpop.trf.xlu0
    %v345 = vpop.trf.xlu0
    %v346 = vpop.trf.xlu0
    %v347 = vpop.trf.xlu0
    %v348 = vpop.trf.xlu0
    %v349 = vpop.trf.xlu0
    %v350 = vpop.trf.xlu0
    %v351 = vpop.trf.xlu0
    %v352 = vpop.trf.xlu0
    %v353 = vpop.trf.xlu0
    %v354 = vpop.trf.xlu0
    %v355 = vpop.trf.xlu0
    %v356 = vpop.trf.xlu0
    %vm357 = vcmask 261120
    %v359 = vsel %vm357, %v341, 0
    %361 = vmatprep.subr.mxu0 %v308
    %362 = vmatpush1.msra.mxu0 %v307
    %363 = vmatprep.subr.mxu0 %v310
    %364 = vmatpush1.msra.mxu0 %v309
    %365 = vmatprep.subr.mxu0 %v312
    %366 = vmatpush1.msra.mxu0 %v311
    %367 = vmatprep.subr.mxu0 %v314
    %368 = vmatpush1.msra.mxu0 %v313
    %369 = vmatprep.subr.mxu0 0.0
    %370 = vmatpush1.msra.mxu0 0.0
    %371 = vmatprep.subr.mxu0 0.0
    %372 = vmatpush1.msra.mxu0 0.0
    %373 = vmatprep.subr.mxu0 0.0
    %374 = vmatpush1.msra.mxu0 0.0
    %375 = vmatprep.subr.mxu0 0.0
    %376 = vmatpush1.msra.mxu0 0.0
    %377 = vmatprep.subr.mxu0 0.0
    %378 = vmatpush1.msra.mxu0 0.0
    %379 = vmatprep.subr.mxu0 0.0
    %380 = vmatpush1.msra.mxu0 0.0
    %381 = vmatprep.subr.mxu0 0.0
    %382 = vmatpush1.msra.mxu0 0.0
    %383 = vmatprep.subr.mxu0 0.0
    %384 = vmatpush1.msra.mxu0 0.0
    %385 = vmatprep.subr.mxu0 0.0
    %386 = vmatpush1.msra.mxu0 0.0
    %387 = vmatprep.subr.mxu0 0.0
    %388 = vmatpush1.msra.mxu0 0.0
    %389 = vmatprep.subr.mxu0 0.0
    %390 = vmatpush1.msra.mxu0 0.0
    %391 = vmatprep.subr.mxu0 0.0
    %392 = vmatpush1.msra.mxu0 0.0
    %393 = vmatprep.subr.mxu0 0.0
    %394 = vmatpush1.msra.mxu0 0.0
    %395 = vmatprep.subr.mxu0 0.0
    %396 = vmatpush1.msra.mxu0 0.0
    %397 = vmatprep.subr.mxu0 0.0
    %398 = vmatpush1.msra.mxu0 0.0
    %399 = vmatprep.subr.mxu0 0.0
    %400 = vmatpush1.msra.mxu0 0.0
    %401 = vmatprep.subr.mxu0 0.0
    %402 = vmatpush1.msra.mxu0 0.0
    %403 = vmatprep.subr.mxu0 0.0
    %404 = vmatpush1.msra.mxu0 0.0
    %405 = vmatprep.subr.mxu0 0.0
    %406 = vmatpush1.msra.mxu0 0.0
    %407 = vmatprep.subr.mxu0 0.0
    %408 = vmatpush1.msra.mxu0 0.0
    %409 = vmatprep.subr.mxu0 0.0
    %410 = vmatpush1.msra.mxu0 0.0
    %411 = vmatprep.subr.mxu0 0.0
    %412 = vmatpush1.msra.mxu0 0.0
    %413 = vmatprep.subr.mxu0 0.0
    %414 = vmatpush1.msra.mxu0 0.0
    %415 = vmatprep.subr.mxu0 0.0
    %416 = vmatpush1.msra.mxu0 0.0
    %417 = vmatprep.subr.mxu0 0.0
    %418 = vmatpush1.msra.mxu0 0.0
    %419 = vmatprep.subr.mxu0 0.0
    %420 = vmatpush1.msra.mxu0 0.0
    %421 = vmatprep.subr.mxu0 0.0
    %422 = vmatpush1.msra.mxu0 0.0
    %423 = vmatprep.subr.mxu0 0.0
    %424 = vmatpush1.msra.mxu0 0.0
    %425 = vmatprep.mubr.f32.mxu0 0.0
    %426 = vmatmul.mubr.f32.gmra.mrb[0].mxu0 %v359
    %v427 = vpop.f32.mrb[0].mxu0
    %v428 = vadd.f32 %v323, %v427
    %v429 = vpop.f32.mrb[0].mxu0
    %v430 = vadd.f32 %v323, %v429
    %431 = vdwg.mxu0
    %v432 = vadd.f32 %v428, %v73
    %v433 = vadd.f32 %v430, %v74
    %v434 = vld [vmem:[%s7] sm:$0x1]
    %v435 = vld [vmem:[%s8] sm:$0x1]
    %436 = vadd.xlane.f32.xlu0 %v432
    %v437 = vpop.xlane.xlu0 %436
    %438 = vadd.xlane.f32.xlu0 %v433
    %v439 = vpop.xlane.xlu0 %438
    %v440 = vmul.f32 %v437, %v81
    %v441 = vmul.f32 %v439, %v81
    %v442 = vsub.f32 %v432, %v440
    %v443 = vsub.f32 %v433, %v441
    %v444 = vmul.f32 %v442, %v442
    %v445 = vmul.f32 %v443, %v443
    %446 = vadd.xlane.f32.xlu0 %v444
    %v447 = vpop.xlane.xlu0 %446
    %448 = vadd.xlane.f32.xlu0 %v445
    %v449 = vpop.xlane.xlu0 %448
    %v450 = vmul.f32 %v447, %v81
    %v451 = vmul.f32 %v449, %v81
    %v452 = vadd.f32 %v450, 1e-05
    %v453 = vadd.f32 %v451, 1e-05
    %v454 = vrsqrt.pop %v452
    %v455 = vrsqrt.pop %v453
    %v456 = vmul.f32 %v442, %v454
    %v457 = vmul.f32 %v443, %v455
    %v459 = vlaneseq
    %v460 = vshrl.u32 %v459, 7
    %v461 = vsub.s32 0, %v460
    %v462 = vrot.slane %v434, %v461
    %v464 = vmul.f32 %v456, %v462
    %v465 = vmul.f32 %v457, %v462
    %v467 = vlaneseq
    %v468 = vshrl.u32 %v467, 7
    %v469 = vsub.s32 0, %v468
    %v470 = vrot.slane %v435, %v469
    %v472 = vadd.f32 %v464, %v470
    %v473 = vadd.f32 %v465, %v470
    %v474 = vld [vmem:[#allocation2] sm:$0xff]
    %v475 = vld [vmem:[#allocation2 + $0x8] sm:$0xff]
    %v476 = vld [vmem:[#allocation2 + $0x10] sm:$0xff]
    %v477 = vld [vmem:[#allocation2 + $0x18] sm:$0xff]
    %v478 = vld [vmem:[#allocation2 + $0x20] sm:$0xff]
    %v479 = vld [vmem:[#allocation2 + $0x28] sm:$0xff]
    %v480 = vld [vmem:[#allocation2 + $0x30] sm:$0xff]
    %v481 = vld [vmem:[#allocation2 + $0x38] sm:$0xff]
    %v482 = vld [vmem:[#allocation2 + $0x40] sm:$0xff]
    %v483 = vld [vmem:[#allocation2 + $0x48] sm:$0xff]
    %v484 = vld [vmem:[#allocation2 + $0x50] sm:$0xff]
    %v485 = vld [vmem:[#allocation2 + $0x58] sm:$0xff]
    %v486 = vld [vmem:[#allocation2 + $0x60] sm:$0xff]
    %v487 = vld [vmem:[#allocation2 + $0x68] sm:$0xff]
    %v488 = vld [vmem:[#allocation2 + $0x70] sm:$0xff]
    %v489 = vld [vmem:[#allocation2 + $0x78] sm:$0xff]
    %v490 = vld [vmem:[%s10] sm:$0x1]
    %v492 = vlaneseq
    %v493 = vshrl.u32 %v492, 7
    %v494 = vsub.s32 0, %v493
    %v495 = vrot.slane %v490, %v494
    %497 = vmatprep.subr.mxu0 0.0
    %498 = vmatpush1.msra.mxu0 %v474
    %499 = vmatprep.subr.mxu0 0.0
    %500 = vmatpush1.msra.mxu0 %v475
    %501 = vmatprep.subr.mxu0 0.0
    %502 = vmatpush1.msra.mxu0 %v476
    %503 = vmatprep.subr.mxu0 0.0
    %504 = vmatpush1.msra.mxu0 %v477
    %505 = vmatprep.subr.mxu0 0.0
    %506 = vmatpush1.msra.mxu0 %v478
    %507 = vmatprep.subr.mxu0 0.0
    %508 = vmatpush1.msra.mxu0 %v479
    %509 = vmatprep.subr.mxu0 0.0
    %510 = vmatpush1.msra.mxu0 %v480
    %511 = vmatprep.subr.mxu0 0.0
    %512 = vmatpush1.msra.mxu0 %v481
    %513 = vmatprep.subr.mxu0 0.0
    %514 = vmatpush1.msra.mxu0 %v482
    %515 = vmatprep.subr.mxu0 0.0
    %516 = vmatpush1.msra.mxu0 %v483
    %517 = vmatprep.subr.mxu0 0.0
    %518 = vmatpush1.msra.mxu0 %v484
    %519 = vmatprep.subr.mxu0 0.0
    %520 = vmatpush1.msra.mxu0 %v485
    %521 = vmatprep.subr.mxu0 0.0
    %522 = vmatpush1.msra.mxu0 %v486
    %523 = vmatprep.subr.mxu0 0.0
    %524 = vmatpush1.msra.mxu0 %v487
    %525 = vmatprep.subr.mxu0 0.0
    %526 = vmatpush1.msra.mxu0 %v488
    %527 = vmatprep.subr.mxu0 0.0
    %528 = vmatpush1.msra.mxu0 %v489
    %529 = vmatprep.subr.mxu0 0.0
    %530 = vmatpush1.msra.mxu0 0.0
    %531 = vmatprep.subr.mxu0 0.0
    %532 = vmatpush1.msra.mxu0 0.0
    %533 = vmatprep.subr.mxu0 0.0
    %534 = vmatpush1.msra.mxu0 0.0
    %535 = vmatprep.subr.mxu0 0.0
    %536 = vmatpush1.msra.mxu0 0.0
    %537 = vmatprep.subr.mxu0 0.0
    %538 = vmatpush1.msra.mxu0 0.0
    %539 = vmatprep.subr.mxu0 0.0
    %540 = vmatpush1.msra.mxu0 0.0
    %541 = vmatprep.subr.mxu0 0.0
    %542 = vmatpush1.msra.mxu0 0.0
    %543 = vmatprep.subr.mxu0 0.0
    %544 = vmatpush1.msra.mxu0 0.0
    %545 = vmatprep.subr.mxu0 0.0
    %546 = vmatpush1.msra.mxu0 0.0
    %547 = vmatprep.subr.mxu0 0.0
    %548 = vmatpush1.msra.mxu0 0.0
    %549 = vmatprep.subr.mxu0 0.0
    %550 = vmatpush1.msra.mxu0 0.0
    %551 = vmatprep.subr.mxu0 0.0
    %552 = vmatpush1.msra.mxu0 0.0
    %553 = vmatprep.subr.mxu0 0.0
    %554 = vmatpush1.msra.mxu0 0.0
    %555 = vmatprep.subr.mxu0 0.0
    %556 = vmatpush1.msra.mxu0 0.0
    %557 = vmatprep.subr.mxu0 0.0
    %558 = vmatpush1.msra.mxu0 0.0
    %559 = vmatprep.subr.mxu0 0.0
    %560 = vmatpush1.msra.mxu0 0.0
    %561 = vmatprep.mubr.f32.mxu0 0.0
    %562 = vmatmul.mubr.f32.gmra.mrb[0].mxu0 %v472
    %v563 = vpop.f32.mrb[0].mxu0
    %v564 = vadd.f32 %v495, %v563
    %v565 = vpop.f32.mrb[0].mxu0
    %566 = vmatprep.mubr.f32.mxu0 0.0
    %567 = vmatmul.mubr.f32.gmra.mrb[0].mxu0 %v473
    %v568 = vpop.f32.mrb[0].mxu0
    %v569 = vadd.f32 %v495, %v568
    %v570 = vpop.f32.mrb[0].mxu0
    %571 = vdwg.mxu0
    %v572 = vmul.f32 %v564, 0.5
    %v573 = vmul.f32 %v569, 0.5
    %v574 = vmul.f32 %v564, 0.70710677
    %v575 = vmul.f32 %v569, 0.70710677
    %v576 = verf.f32.pop %v574
    %v577 = verf.f32.pop %v575
    %v578 = vadd.f32 %v576, 1.0
    %v579 = vadd.f32 %v577, 1.0
    %v580 = vmul.f32 %v572, %v578
    %v581 = vmul.f32 %v573, %v579
    %v582 = vld [vmem:[#allocation5] sm:$0xff]
    %v583 = vld [vmem:[#allocation5 + $0x8] sm:$0xff]
    %v584 = vld [vmem:[#allocation5 + $0x10] sm:$0xff]
    %v585 = vld [vmem:[#allocation5 + $0x18] sm:$0xff]
    %v586 = vld [vmem:[#allocation5 + $0x20] sm:$0xff]
    %v587 = vld [vmem:[#allocation5 + $0x28] sm:$0xff]
    %v588 = vld [vmem:[#allocation5 + $0x30] sm:$0xff]
    %v589 = vld [vmem:[#allocation5 + $0x38] sm:$0xff]
    %v590 = vld [vmem:[#allocation5 + $0x40] sm:$0xff]
    %v591 = vld [vmem:[#allocation5 + $0x48] sm:$0xff]
    %v592 = vld [vmem:[#allocation5 + $0x50] sm:$0xff]
    %v593 = vld [vmem:[#allocation5 + $0x58] sm:$0xff]
    %v594 = vld [vmem:[#allocation5 + $0x60] sm:$0xff]
    %v595 = vld [vmem:[#allocation5 + $0x68] sm:$0xff]
    %v596 = vld [vmem:[#allocation5 + $0x70] sm:$0xff]
    %v597 = vld [vmem:[#allocation5 + $0x78] sm:$0xff]
    %v598 = vld [vmem:[%s12] sm:$0x1]
    %v600 = vlaneseq
    %v601 = vshrl.u32 %v600, 7
    %v602 = vsub.s32 0, %v601
    %v603 = vrot.slane %v598, %v602
    %605 = vmatprep.subr.mxu0 0.0
    %606 = vmatpush1.msra.mxu0 %v582
    %607 = vmatprep.subr.mxu0 0.0
    %608 = vmatpush1.msra.mxu0 %v583
    %609 = vmatprep.subr.mxu0 0.0
    %610 = vmatpush1.msra.mxu0 %v584
    %611 = vmatprep.subr.mxu0 0.0
    %612 = vmatpush1.msra.mxu0 %v585
    %613 = vmatprep.subr.mxu0 0.0
    %614 = vmatpush1.msra.mxu0 %v586
    %615 = vmatprep.subr.mxu0 0.0
    %616 = vmatpush1.msra.mxu0 %v587
    %617 = vmatprep.subr.mxu0 0.0
    %618 = vmatpush1.msra.mxu0 %v588
    %619 = vmatprep.subr.mxu0 0.0
    %620 = vmatpush1.msra.mxu0 %v589
    %621 = vmatprep.subr.mxu0 0.0
    %622 = vmatpush1.msra.mxu0 %v590
    %623 = vmatprep.subr.mxu0 0.0
    %624 = vmatpush1.msra.mxu0 %v591
    %625 = vmatprep.subr.mxu0 0.0
    %626 = vmatpush1.msra.mxu0 %v592
    %627 = vmatprep.subr.mxu0 0.0
    %628 = vmatpush1.msra.mxu0 %v593
    %629 = vmatprep.subr.mxu0 0.0
    %630 = vmatpush1.msra.mxu0 %v594
    %631 = vmatprep.subr.mxu0 0.0
    %632 = vmatpush1.msra.mxu0 %v595
    %633 = vmatprep.subr.mxu0 0.0
    %634 = vmatpush1.msra.mxu0 %v596
    %635 = vmatprep.subr.mxu0 0.0
    %636 = vmatpush1.msra.mxu0 %v597
    %637 = vmatprep.subr.mxu0 0.0
    %638 = vmatpush1.msra.mxu0 0.0
    %639 = vmatprep.subr.mxu0 0.0
    %640 = vmatpush1.msra.mxu0 0.0
    %641 = vmatprep.subr.mxu0 0.0
    %642 = vmatpush1.msra.mxu0 0.0
    %643 = vmatprep.subr.mxu0 0.0
    %644 = vmatpush1.msra.mxu0 0.0
    %645 = vmatprep.subr.mxu0 0.0
    %646 = vmatpush1.msra.mxu0 0.0
    %647 = vmatprep.subr.mxu0 0.0
    %648 = vmatpush1.msra.mxu0 0.0
    %649 = vmatprep.subr.mxu0 0.0
    %650 = vmatpush1.msra.mxu0 0.0
    %651 = vmatprep.subr.mxu0 0.0
    %652 = vmatpush1.msra.mxu0 0.0
    %653 = vmatprep.subr.mxu0 0.0
    %654 = vmatpush1.msra.mxu0 0.0
    %655 = vmatprep.subr.mxu0 0.0
    %656 = vmatpush1.msra.mxu0 0.0
    %657 = vmatprep.subr.mxu0 0.0
    %658 = vmatpush1.msra.mxu0 0.0
    %659 = vmatprep.subr.mxu0 0.0
    %660 = vmatpush1.msra.mxu0 0.0
    %661 = vmatprep.subr.mxu0 0.0
    %662 = vmatpush1.msra.mxu0 0.0
    %663 = vmatprep.subr.mxu0 0.0
    %664 = vmatpush1.msra.mxu0 0.0
    %665 = vmatprep.subr.mxu0 0.0
    %666 = vmatpush1.msra.mxu0 0.0
    %667 = vmatprep.subr.mxu0 0.0
    %668 = vmatpush1.msra.mxu0 0.0
    %669 = vmatprep.mubr.f32.mxu0 0.0
    %670 = vmatmul.mubr.f32.gmra.mrb[0].mxu0 %v580
    %v671 = vpop.f32.mrb[0].mxu0
    %v672 = vadd.f32 %v603, %v671
    %v673 = vpop.f32.mrb[0].mxu0
    %674 = vmatprep.mubr.f32.mxu0 0.0
    %675 = vmatmul.mubr.f32.gmra.mrb[0].mxu0 %v581
    %v676 = vpop.f32.mrb[0].mxu0
    %v677 = vadd.f32 %v603, %v676
    %v678 = vpop.f32.mrb[0].mxu0
    %679 = vdwg.mxu0
    %v680 = vadd.f32 %v672, %v432
    %v681 = vadd.f32 %v677, %v433
    %682 = vst [vmem:[#allocation7] sm:$0xff] %v680
    %683 = vst [vmem:[#allocation7 + $0x8] sm:$0xff] %v681
    // Predicated region
    $region62: #{tpu_custom_call.1} parent=1 // pred_check
      _
    $region63: #{tpu_custom_call.1} parent=1 // pred_check_branch
      %685 = sbr.rel (0) target = $region65
    $region64: #{tpu_custom_call.1} parent=1 // pred_region
      %s687 = ssub.s32 256, 256
      %688 = vsyncadd [#allocation4], %s687
      %s689 = sshll.u32 [#allocation7], 4
      %s690 = int_to_ptr.vmem [resolvable:$true] %s689
      %695 = dma.vmem_to_hbm [thread:$0]  %s690, 256, %s13, [#allocation4], 128, 128, 8
    $region65: #{tpu_custom_call.1} parent=1 // pred_fallthru
      _
    // Predicated region
    $region66: #{tpu_custom_call.1} parent=1 // pred_check
      _
    $region67: #{tpu_custom_call.1} parent=1 // pred_check_branch
      %697 = sbr.rel (0) target = $region69
    $region68: #{tpu_custom_call.1} parent=1 // pred_region
      %698 = dma.done [#allocation4], 256
    $region69: #{tpu_custom_call.1} parent=1 // pred_fallthru
      _
    %699 = vsyncpa [#allocation3], 1
    %700 = vsyncpa [#allocation6], 1
    %701 = vsyncpa [#allocation4], 1

</llo_original>
